<compile_context>
chip_gen: v6e
topology: v6e:2x2x1
jax: 0.10.0
libtpu: 0.0.40
codegen_flags: <defaults>
</compile_context>

<pallas_src>
import functools

import jax
import jax.numpy as jnp
from jax.experimental import pallas as pl
from jax.experimental.pallas import tpu as pltpu

SCALE = 500.0


def _wdect_points_kernel(lin_ref, nh_ref, oh_ref, out_ref, *, s_blk, mm_dtype):
    """Grid = (S-blocks, N-blocks).  N is the (innermost) reduction axis.

    lin_ref : VMEM (1, 1, s_blk*T)  SCALE*thresholds, lane-expanded (t fast, s_local slow)
    nh_ref  : VMEM (n_blk, T)       SCALE*node-heights tile
    oh_ref  : VMEM (B, n_blk)       one-hot graph membership tile (segment-sum as matmul)
    out_ref : VMEM (1, B, s_blk*T)  lane-dense ECT slab for this S-block (accumulated over N)
    """
    @pl.when(pl.program_id(1) == 0)
    def _():
        out_ref[...] = jnp.zeros_like(out_ref)

    # Lane-dense ecc tile: [n_blk, s_blk*T], column (s_local*T + t) = sigmoid(a*lin_s - a*nh_t).
    nh_tiled = jnp.tile(nh_ref[...], (1, s_blk))            # [n_blk, s_blk*T]
    ecc = jax.nn.sigmoid(lin_ref[0] - nh_tiled)              # broadcast [1,L] - [n_blk,L]

    # Segment-sum over nodes per graph as one MXU matmul: [B, n_blk] @ [n_blk, s_blk*T].
    out_ref[0] += jnp.dot(oh_ref[...].astype(mm_dtype), ecc.astype(mm_dtype),
                          preferred_element_type=jnp.float32)


def wdect_points(x, node_weights, batch_idx, v, lin, num_graphs, *,
                 s_blk=None, n_blk=None, matmul_dtype=jnp.bfloat16):
    """WDECTLayer forward (points variant, normalized=False).  Returns [S, B, T] float32."""
    N, _ = x.shape
    T = v.shape[-1]
    S = lin.shape[0]
    B = int(num_graphs)

    x = x.astype(jnp.float32)
    nw = node_weights.reshape(N, 1).astype(jnp.float32)
    v = v.astype(jnp.float32)
    lin = lin.reshape(-1).astype(jnp.float32)

    # nh computed with plain XLA in the wrapper (tiny [N,d]@[d,T] matmul); SCALE is folded in
    # here so the kernel inner loop is just a subtract + EUP sigmoid.
    nh_scaled = SCALE * ((x * nw) @ v)                                   # [N, T]

    onehot = (batch_idx[None, :] ==
              jnp.arange(B, dtype=batch_idx.dtype)[:, None]).astype(jnp.float32)  # [B, N]

    # ---- blockings ---------------------------------------------------------
    if s_blk is None:
        s_blk = min(S, max(1, pl.cdiv(512, T)))   # make the lane dim >= 128 (target ~512)
    num_s = pl.cdiv(S, s_blk)
    S_pad = num_s * s_blk

    if n_blk is None:
        n_blk = N                                  # single N tile (small problems)
    num_n = pl.cdiv(N, n_blk)
    N_pad = num_n * n_blk
    L = s_blk * T

    # ---- host-side layout / padding ---------------------------------------
    lin_pad = jnp.pad(SCALE * lin, (0, S_pad - S))                        # padded steps sliced off
    lin_lanes = jnp.repeat(lin_pad, T).reshape(num_s, 1, L)               # (s_local major, t minor)
    nh_p = jnp.pad(nh_scaled, ((0, N_pad - N), (0, 0)))
    oh_p = jnp.pad(onehot, ((0, 0), (0, N_pad - N)))                      # zero cols => no contribution

    kernel = functools.partial(_wdect_points_kernel, s_blk=s_blk, mm_dtype=matmul_dtype)

    grid_spec = pltpu.PrefetchScalarGridSpec(
        num_scalar_prefetch=0,
        grid=(num_s, num_n),                      # reduction axis (N) last
        in_specs=[
            pl.BlockSpec((1, 1, L), lambda s, n: (s, 0, 0)),      # scaled thresholds (lane-expanded)
            pl.BlockSpec((n_blk, T), lambda s, n: (n, 0)),        # scaled node heights
            pl.BlockSpec((B, n_blk), lambda s, n: (0, n)),        # one-hot graph membership
        ],
        out_specs=pl.BlockSpec((1, B, L), lambda s, n: (s, 0, 0)),
    )

    out = pl.pallas_call(
        kernel,
        out_shape=jax.ShapeDtypeStruct((num_s, B, L), jnp.float32),
        grid_spec=grid_spec,
        compiler_params=pltpu.CompilerParams(
            # S-blocks are independent -> "parallel" (shards across v7x's 2 TCs);
            # N carries the resident-output accumulation -> "arbitrary".
            dimension_semantics=("parallel", "arbitrary"),
            vmem_limit_bytes=32 * 1024 * 1024,    # explicit (v5e default scoped VMEM is only 16 MiB)
        ),
    )(lin_lanes, nh_p, oh_p)

    # [num_s, B, s_blk*T] -> [S, B, T]
    out = out.reshape(num_s, B, s_blk, T).transpose(0, 2, 1, 3).reshape(S_pad, B, T)
    return out[:S]


# TODO(synk): "edges"/"faces" ect_types need a gather over edge_index/face (nh[edge_index].max(0))
#             and the normalized=True path; only the "points", un-normalized forward is covered.


if __name__ == "__main__":
    key = jax.random.PRNGKey(0)
    # Small, forward-consistent shapes: N nodes, d coords, T directions, S bump steps, B graphs.
    N, d, T, S, B = 16, 3, 8, 16, 2
    radius = 1.0

    k1, k2, k3 = jax.random.split(key, 3)
    x = jax.random.normal(k1, (N, d), dtype=jnp.float32)                  # batch.x
    node_weights = jax.random.uniform(k2, (N,), dtype=jnp.float32)        # batch.node_weights
    v = jax.random.normal(k3, (d, T), dtype=jnp.float32)                  # direction vectors
    v = v / jnp.linalg.norm(v, axis=0, keepdims=True)
    batch_idx = jnp.repeat(jnp.arange(B, dtype=jnp.int32), N // B)        # batch.batch
    lin = jnp.linspace(-radius, radius, S, dtype=jnp.float32)             # self.lin (squeezed)

    out = jax.block_until_ready(wdect_points(x, node_weights, batch_idx, v, lin, B))

    # Pure-JAX f32 reference of the PyTorch forward (points, un-normalized, squeezed).
    nh_ref = (x * node_weights[:, None]) @ v                              # [N, T]
    ecc_ref = jax.nn.sigmoid(SCALE * (lin[:, None, None] - nh_ref[None])) # [S, N, T]
    onehot = (batch_idx[None, :] == jnp.arange(B)[:, None]).astype(jnp.float32)
    ref = jnp.einsum("bn,snt->sbt", onehot, ecc_ref)                      # [S, B, T]

    assert out.shape == (S, B, T), out.shape
    # Default path uses bf16 MXU inputs with f32 accumulation -> ~3 decimal digits on ecc.
    assert jnp.allclose(out, ref, atol=5e-2, rtol=0.0), float(jnp.max(jnp.abs(out - ref)))

    # Full-f32 matmul path should match the reference tightly.
    out_f32 = jax.block_until_ready(
        wdect_points(x, node_weights, batch_idx, v, lin, B, matmul_dtype=jnp.float32))
    assert jnp.allclose(out_f32, ref, atol=1e-3, rtol=1e-3), \
        float(jnp.max(jnp.abs(out_f32 - ref)))

    print("KERNEL_OK")
</pallas_src>

<mosaic_0001>
module attributes {stable_mosaic.version = 11 : i64} {
  func.func @_wdect_points_kernel(%arg0: i32, %arg1: i32, %arg2: memref<1x1x128xf32, #tpu.memory_space<vmem>>, %arg3: memref<16x8xf32, #tpu.memory_space<vmem>>, %arg4: memref<2x16xf32, #tpu.memory_space<vmem>>, %arg5: memref<1x2x128xf32, #tpu.memory_space<vmem>>) attributes {dimension_semantics = [#tpu.dimension_semantics<parallel>, #tpu.dimension_semantics<arbitrary>], iteration_bounds = array<i64: 1, 1>, scalar_prefetch = 0 : i64, scratch_operands = 0 : i64, tpu.core_type = #tpu.core_type<tc>, window_params = [{transform_indices = @transform_0, window_bounds = array<i64: 1, 1, 128>}, {transform_indices = @transform_1, window_bounds = array<i64: 16, 8>}, {transform_indices = @transform_2, window_bounds = array<i64: 2, 16>}, {transform_indices = @transform_3, window_bounds = array<i64: 1, 2, 128>}]} {
    %c0_i32 = arith.constant 0 : i32
    %0 = arith.cmpi eq, %arg1, %c0_i32 : i32
    %1 = arith.extui %0 : i1 to i32
    %c0_i32_0 = arith.constant 0 : i32
    %2 = arith.cmpi ne, %1, %c0_i32_0 : i32
    scf.if %2 {
      %cst_14 = arith.constant 0.000000e+00 : f32
      %24 = vector.broadcast %cst_14 : f32 to vector<1x2x128xf32>
      %c0_15 = arith.constant 0 : index
      %c0_16 = arith.constant 0 : index
      %c0_17 = arith.constant 0 : index
      %25 = vector.load %arg5[%c0_15, %c0_16, %c0_17] : memref<1x2x128xf32, #tpu.memory_space<vmem>>, vector<1x2x128xf32>
      tpu.vector_store %arg5[%c0_15, %c0_16, %c0_17], %24 {strides = array<i32>} : memref<1x2x128xf32, #tpu.memory_space<vmem>>, vector<1x2x128xf32>,
    } else {
    }
    %c0 = arith.constant 0 : index
    %c0_1 = arith.constant 0 : index
    %3 = vector.load %arg3[%c0, %c0_1] : memref<16x8xf32, #tpu.memory_space<vmem>>, vector<16x8xf32>
    %4 = tpu.concatenate %3, %3, %3, %3, %3, %3, %3, %3, %3, %3, %3, %3, %3, %3, %3, %3 in 1 : vector<16x8xf32>, vector<16x8xf32>, vector<16x8xf32>, vector<16x8xf32>, vector<16x8xf32>, vector<16x8xf32>, vector<16x8xf32>, vector<16x8xf32>, vector<16x8xf32>, vector<16x8xf32>, vector<16x8xf32>, vector<16x8xf32>, vector<16x8xf32>, vector<16x8xf32>, vector<16x8xf32>, vector<16x8xf32> -> vector<16x128xf32>
    %c0_2 = arith.constant 0 : index
    %c0_3 = arith.constant 0 : index
    %c0_4 = arith.constant 0 : index
    %5 = vector.load %arg2[%c0_2, %c0_3, %c0_4] : memref<1x1x128xf32, #tpu.memory_space<vmem>>, vector<1x1x128xf32>
    %6 = vector.shape_cast %5 : vector<1x1x128xf32> to vector<1x128xf32>
    %7 = vector.broadcast %6 : vector<1x128xf32> to vector<16x128xf32>
    %8 = arith.subf %7, %4 : vector<16x128xf32>
    %9 = arith.negf %8 : vector<16x128xf32>
    %10 = math.exp %9 : vector<16x128xf32>
    %cst = arith.constant 1.000000e+00 : f32
    %11 = vector.broadcast %cst : f32 to vector<16x128xf32>
    %12 = arith.addf %11, %10 : vector<16x128xf32>
    %13 = arith.divf %11, %12 : vector<16x128xf32>
    %c0_5 = arith.constant 0 : index
    %c0_6 = arith.constant 0 : index
    %c0_7 = arith.constant 0 : index
    %14 = vector.load %arg5[%c0_5, %c0_6, %c0_7] : memref<1x2x128xf32, #tpu.memory_space<vmem>>, vector<1x2x128xf32>
    %15 = vector.shape_cast %14 : vector<1x2x128xf32> to vector<2x128xf32>
    %c0_8 = arith.constant 0 : index
    %c0_9 = arith.constant 0 : index
    %16 = vector.load %arg4[%c0_8, %c0_9] : memref<2x16xf32, #tpu.memory_space<vmem>>, vector<2x16xf32>
    %17 = arith.truncf %16 : vector<2x16xf32> to vector<2x16xbf16>
    %18 = arith.truncf %13 : vector<16x128xf32> to vector<16x128xbf16>
    %cst_10 = arith.constant dense<0.000000e+00> : vector<2x128xf32>
    %19 = tpu.matmul %17, %18, %cst_10 {dimension_numbers = #tpu.dot_dimension_numbers<[1], [0], [0], [1], [0, 0, 1, 1], [], []>} : vector<2x16xbf16>, vector<16x128xbf16>, vector<2x128xf32> -> vector<2x128xf32>
    %20 = arith.addf %15, %19 : vector<2x128xf32>
    %c0_11 = arith.constant 0 : index
    %c0_12 = arith.constant 0 : index
    %c0_13 = arith.constant 0 : index
    %21 = vector.load %arg5[%c0_11, %c0_12, %c0_13] : memref<1x2x128xf32, #tpu.memory_space<vmem>>, vector<1x2x128xf32>
    %22 = vector.shape_cast %21 : vector<1x2x128xf32> to vector<2x128xf32>
    %23 = vector.shape_cast %20 : vector<2x128xf32> to vector<1x2x128xf32>
    tpu.vector_store %arg5[%c0_11, %c0_12, %c0_13], %23 {strides = array<i32>} : memref<1x2x128xf32, #tpu.memory_space<vmem>>, vector<1x2x128xf32>,
    return
  }
  func.func @transform_0(%arg0: i32, %arg1: i32) -> (i32, i32, i32) {
    %c0_i32 = arith.constant 0 : i32
    %c0_i32_0 = arith.constant 0 : i32
    %c0_i32_1 = arith.constant 0 : i32
    return %arg0, %c0_i32, %c0_i32_0 : i32, i32, i32
  }
  func.func @transform_1(%arg0: i32, %arg1: i32) -> (i32, i32) {
    %c0_i32 = arith.constant 0 : i32
    %c0_i32_0 = arith.constant 0 : i32
    return %arg1, %c0_i32 : i32, i32
  }
  func.func @transform_2(%arg0: i32, %arg1: i32) -> (i32, i32) {
    %c0_i32 = arith.constant 0 : i32
    %c0_i32_0 = arith.constant 0 : i32
    return %c0_i32, %arg1 : i32, i32
  }
  func.func @transform_3(%arg0: i32, %arg1: i32) -> (i32, i32, i32) {
    %c0_i32 = arith.constant 0 : i32
    %c0_i32_0 = arith.constant 0 : i32
    %c0_i32_1 = arith.constant 0 : i32
    return %arg0, %c0_i32, %c0_i32_0 : i32, i32, i32
  }
}

</mosaic_0001>

<llo_original>
// kernel: tpu_custom_call.1
$region0: #{tpu_custom_call.1}
  #allocation0 [shape = 'u32[]', space=smem, size = 0x4, offset = 0x4, fixed_abs, tag = 'smem constant byte address 0x4 - core index']
  #allocation1 [shape = 'u32[144,128]{1,0:T(1,128)}', space=vmem, size = 0x12000, scoped, tag = 'internal scratch']
  %s0 = inlined_call_operand.vmem [shape: f32[1,1,128], index: 0, kind: input, shape index: {}]
  %s1 = inlined_call_operand.vmem [shape: f32[16,8], index: 1, kind: input, shape index: {}]
  %s2 = inlined_call_operand.vmem [shape: f32[2,16], index: 2, kind: input, shape index: {}]
  %s3 = inlined_call_operand.hbm [shape: f32[1,2,128], index: 3, kind: output, shape index: {}]
  %s4 = sld [smem:[#allocation0]]
  $region26: #{tpu_custom_call.1} parent=0
    _
  %s6 = ssub.s32 1, %s4
  %s7 = scalar_select 0, %s6, %s4
  $region1: #{tpu_custom_call.1} parent=0
    #allocation2 [shape = 'u8[1024]{0}', space=vmem, size = 0x400, scoped, tag = 'output window, operand 0, single buffered']
    #allocation3 [shape = 's32[1]{0}', space=sflag, size = 0x4, scoped, tag = 'scoped memory for tpu_custom_call.1']
    %8 = vsyncpa [#allocation3], 0
    // Predicated region
    $region2: #{tpu_custom_call.1} parent=1 // pred_check
      _
    $region3: #{tpu_custom_call.1} parent=1 // pred_check_branch
      %10 = sbr.rel (0) target = $region5
    $region4: #{tpu_custom_call.1} parent=1 // pred_region
      _
    $region5: #{tpu_custom_call.1} parent=1 // pred_fallthru
      _
    // Predicated region
    $region6: #{tpu_custom_call.1} parent=1 // pred_check
      _
    $region7: #{tpu_custom_call.1} parent=1 // pred_check_branch
      %12 = sbr.rel (0) target = $region9
    $region8: #{tpu_custom_call.1} parent=1 // pred_region
      _
    $region9: #{tpu_custom_call.1} parent=1 // pred_fallthru
      _
    // Predicated region
    $region10: #{tpu_custom_call.1} parent=1 // pred_check
      _
    $region11: #{tpu_custom_call.1} parent=1 // pred_check_branch
      %14 = sbr.rel (0) target = $region13
    $region12: #{tpu_custom_call.1} parent=1 // pred_region
      _
    $region13: #{tpu_custom_call.1} parent=1 // pred_fallthru
      _
    %p16 = scmp.eq.s32.totalorder 0, 0
    // Predicated region
    $region14: #{tpu_custom_call.1} parent=1 // pred_check
      %p17 = pneg %p16
    $region15: #{tpu_custom_call.1} parent=1 // pred_check_branch
      %19 = sbr.rel (%p17) target = $region17
    $region16: #{tpu_custom_call.1} parent=1 // pred_region
      %20 = vst [vmem:[#allocation2] sm:$0x3] 0.0
    $region17: #{tpu_custom_call.1} parent=1 // pred_fallthru
      _
    %v21 = vld [vmem:[%s1] sm:$0xff]
    %v22 = vld [vmem:[%s1 + $0x8] sm:$0xff]
    %25 = vrot.lane.b32.xlu0 %v21, 8
    %v26 = vpop.permute.xlu0 %25
    %27 = vrot.lane.b32.xlu0 %v22, 8
    %v28 = vpop.permute.xlu0 %27
    %31 = vrot.lane.b32.xlu0 %v21, 16
    %v32 = vpop.permute.xlu0 %31
    %33 = vrot.lane.b32.xlu0 %v22, 16
    %v34 = vpop.permute.xlu0 %33
    %37 = vrot.lane.b32.xlu0 %v21, 24
    %v38 = vpop.permute.xlu0 %37
    %39 = vrot.lane.b32.xlu0 %v22, 24
    %v40 = vpop.permute.xlu0 %39
    %43 = vrot.lane.b32.xlu0 %v21, 32
    %v44 = vpop.permute.xlu0 %43
    %45 = vrot.lane.b32.xlu0 %v22, 32
    %v46 = vpop.permute.xlu0 %45
    %49 = vrot.lane.b32.xlu0 %v21, 40
    %v50 = vpop.permute.xlu0 %49
    %51 = vrot.lane.b32.xlu0 %v22, 40
    %v52 = vpop.permute.xlu0 %51
    %55 = vrot.lane.b32.xlu0 %v21, 48
    %v56 = vpop.permute.xlu0 %55
    %57 = vrot.lane.b32.xlu0 %v22, 48
    %v58 = vpop.permute.xlu0 %57
    %61 = vrot.lane.b32.xlu0 %v21, 56
    %v62 = vpop.permute.xlu0 %61
    %63 = vrot.lane.b32.xlu0 %v22, 56
    %v64 = vpop.permute.xlu0 %63
    %67 = vrot.lane.b32.xlu0 %v21, 64
    %v68 = vpop.permute.xlu0 %67
    %69 = vrot.lane.b32.xlu0 %v22, 64
    %v70 = vpop.permute.xlu0 %69
    %73 = vrot.lane.b32.xlu0 %v21, 72
    %v74 = vpop.permute.xlu0 %73
    %75 = vrot.lane.b32.xlu0 %v22, 72
    %v76 = vpop.permute.xlu0 %75
    %79 = vrot.lane.b32.xlu0 %v21, 80
    %v80 = vpop.permute.xlu0 %79
    %81 = vrot.lane.b32.xlu0 %v22, 80
    %v82 = vpop.permute.xlu0 %81
    %85 = vrot.lane.b32.xlu0 %v21, 88
    %v86 = vpop.permute.xlu0 %85
    %87 = vrot.lane.b32.xlu0 %v22, 88
    %v88 = vpop.permute.xlu0 %87
    %91 = vrot.lane.b32.xlu0 %v21, 96
    %v92 = vpop.permute.xlu0 %91
    %93 = vrot.lane.b32.xlu0 %v22, 96
    %v94 = vpop.permute.xlu0 %93
    %97 = vrot.lane.b32.xlu0 %v21, 104
    %v98 = vpop.permute.xlu0 %97
    %99 = vrot.lane.b32.xlu0 %v22, 104
    %v100 = vpop.permute.xlu0 %99
    %103 = vrot.lane.b32.xlu0 %v21, 112
    %v104 = vpop.permute.xlu0 %103
    %105 = vrot.lane.b32.xlu0 %v22, 112
    %v106 = vpop.permute.xlu0 %105
    %109 = vrot.lane.b32.xlu0 %v21, 120
    %v110 = vpop.permute.xlu0 %109
    %111 = vrot.lane.b32.xlu0 %v22, 120
    %v112 = vpop.permute.xlu0 %111
    %vm115 = vcmask 64512
    %v116 = vsel %vm115, %v21, %v26
    %v117 = vsel %vm115, %v22, %v28
    %vm118 = vcmask 130048
    %v119 = vsel %vm118, %v116, %v32
    %v120 = vsel %vm118, %v117, %v34
    %vm121 = vcmask 195584
    %v122 = vsel %vm121, %v119, %v38
    %v123 = vsel %vm121, %v120, %v40
    %vm124 = vcmask 261120
    %v125 = vsel %vm124, %v122, %v44
    %v126 = vsel %vm124, %v123, %v46
    %vm127 = vcmask 326656
    %v128 = vsel %vm127, %v125, %v50
    %v129 = vsel %vm127, %v126, %v52
    %vm130 = vcmask 392192
    %v131 = vsel %vm130, %v128, %v56
    %v132 = vsel %vm130, %v129, %v58
    %vm133 = vcmask 457728
    %v134 = vsel %vm133, %v131, %v62
    %v135 = vsel %vm133, %v132, %v64
    %vm136 = vcmask 523264
    %v137 = vsel %vm136, %v134, %v68
    %v138 = vsel %vm136, %v135, %v70
    %vm139 = vcmask 588800
    %v140 = vsel %vm139, %v137, %v74
    %v141 = vsel %vm139, %v138, %v76
    %vm142 = vcmask 654336
    %v143 = vsel %vm142, %v140, %v80
    %v144 = vsel %vm142, %v141, %v82
    %vm145 = vcmask 719872
    %v146 = vsel %vm145, %v143, %v86
    %v147 = vsel %vm145, %v144, %v88
    %vm148 = vcmask 785408
    %v149 = vsel %vm148, %v146, %v92
    %v150 = vsel %vm148, %v147, %v94
    %vm151 = vcmask 850944
    %v152 = vsel %vm151, %v149, %v98
    %v153 = vsel %vm151, %v150, %v100
    %vm154 = vcmask 916480
    %v155 = vsel %vm154, %v152, %v104
    %v156 = vsel %vm154, %v153, %v106
    %vm157 = vcmask 982016
    %v158 = vsel %vm157, %v155, %v110
    %v159 = vsel %vm157, %v156, %v112
    %v160 = vld [vmem:[%s0] sm:$0x1]
    %v162 = vlaneseq
    %v163 = vshrl.u32 %v162, 7
    %v164 = vsub.s32 0, %v163
    %v165 = vrot.slane %v160, %v164
    %v167 = vsub.f32 %v165, %v158
    %v168 = vsub.f32 %v165, %v159
    %v169 = vxor.u32 %v167, 2147483648
    %v170 = vxor.u32 %v168, 2147483648
    %v171 = vmul.f32 %v169, 1.442695
    %v172 = vpow.pop %v171
    %v173 = vmul.f32 %v170, 1.442695
    %v174 = vpow.pop %v173
    %v175 = vadd.f32 %v172, 1.0
    %v176 = vadd.f32 %v174, 1.0
    %v177 = vrcp.pop %v175
    %v178 = vmul.f32 1.0, %v177
    %v179 = vrcp.pop %v176
    %v180 = vmul.f32 1.0, %v179
    %v181 = vld [vmem:[#allocation2] sm:$0x3]
    %v182 = vld [vmem:[%s2] sm:$0x3]
    %v183 = vpack.c.bf16 %v182, %v182
    %v184 = vpack.c.bf16 %v180, %v178
    %v186 = vsel %vm118, %v183, 0
    %188 = vmatprep.subr.bf16.mxu0 0
    %189 = vmatpush1.bf16.msra.mxu0 0
    %190 = vmatprep.subr.bf16.mxu0 0
    %191 = vmatpush1.bf16.msra.mxu0 0
    %192 = vmatprep.subr.bf16.mxu0 0
    %193 = vmatpush1.bf16.msra.mxu0 0
    %194 = vmatprep.subr.bf16.mxu0 0
    %195 = vmatpush1.bf16.msra.mxu0 0
    %196 = vmatprep.subr.bf16.mxu0 0
    %197 = vmatpush1.bf16.msra.mxu0 0
    %198 = vmatprep.subr.bf16.mxu0 0
    %199 = vmatpush1.bf16.msra.mxu0 0
    %200 = vmatprep.subr.bf16.mxu0 0
    %201 = vmatpush1.bf16.msra.mxu0 0
    %202 = vmatprep.subr.bf16.mxu0 0
    %203 = vmatpush1.bf16.msra.mxu0 %v184
    %204 = vmatprep.subr.bf16.mxu0 0
    %205 = vmatpush2.bf16.msra.mxu0 0
    %206 = vmatprep.subr.bf16.mxu0 0
    %207 = vmatpush2.bf16.msra.mxu0 0
    %208 = vmatprep.subr.bf16.mxu0 0
    %209 = vmatpush2.bf16.msra.mxu0 0
    %210 = vmatprep.subr.bf16.mxu0 0
    %211 = vmatpush2.bf16.msra.mxu0 0
    %212 = vmatprep.subr.bf16.mxu0 0
    %213 = vmatpush2.bf16.msra.mxu0 0
    %214 = vmatprep.subr.bf16.mxu0 0
    %215 = vmatpush2.bf16.msra.mxu0 0
    %216 = vmatprep.subr.bf16.mxu0 0
    %217 = vmatpush2.bf16.msra.mxu0 0
    %218 = vmatprep.subr.bf16.mxu0 0
    %219 = vmatpush2.bf16.msra.mxu0 0
    %220 = vmatprep.mubr.bf16.mxu0 0
    %221 = vmatmul.mubr.bf16.gmra.mxu0 %v186
    %v222 = vpop.f32.mrf.mxu0
    %v223 = vadd.f32 0.0, %v222
    %v224 = vpop.f32.mrf.mxu0
    %v225 = vpop.f32.mrf.mxu0
    %v226 = vpop.f32.mrf.mxu0
    %227 = vdwg.mxu0
    %v228 = vadd.f32 %v181, %v223
    %229 = vst [vmem:[#allocation2] sm:$0x3] %v228
    // Predicated region
    $region18: #{tpu_custom_call.1} parent=1 // pred_check
      _
    $region19: #{tpu_custom_call.1} parent=1 // pred_check_branch
      %231 = sbr.rel (0) target = $region21
    $region20: #{tpu_custom_call.1} parent=1 // pred_region
      %s233 = ssub.s32 32, 32
      %234 = vsyncadd [#allocation3], %s233
      %s236 = sshll.u32 [#allocation2], 4
      %s237 = int_to_ptr.vmem [resolvable:$true] %s236
      %239 = dma.vmem_to_hbm [thread:$0]  %s237, 32, %s3, [#allocation3]
    $region21: #{tpu_custom_call.1} parent=1 // pred_fallthru
      _
    // Predicated region
    $region22: #{tpu_custom_call.1} parent=1 // pred_check
      _
    $region23: #{tpu_custom_call.1} parent=1 // pred_check_branch
      %241 = sbr.rel (0) target = $region25
    $region24: #{tpu_custom_call.1} parent=1 // pred_region
      %242 = dma.done [#allocation3], 32
    $region25: #{tpu_custom_call.1} parent=1 // pred_fallthru
      _
    %243 = vsyncpa [#allocation3], 1

</llo_original>
